<compile_context>
chip_gen: v5e
topology: v5e:2x2
jax: 0.10.0
libtpu: 0.0.40
codegen_flags: <defaults>
</compile_context>

<pallas_src>
import functools

import jax
import jax.numpy as jnp
from jax.experimental import pallas as pl
from jax.experimental.pallas import tpu as pltpu


_SQRT_HALF = 0.7071067811865476
_LANE = 128
_MAX_HW_TILE = 16384  # lane cap: large enough to amortize ~0.35us/grid-step overhead


def _round_up(x, m):
    return -(-x // m) * m


def _vmem_capacity_bytes():
    """Physical VMEM per core (fallback: 128 MiB = v5e/v6e size)."""
    try:
        info = pltpu.get_tpu_info()
        cap = int(getattr(info, "vmem_capacity_bytes", 0))
        if cap > 0:
            return cap
    except Exception:
        pass
    return 128 * 1024 * 1024


def _plan_hw_tiling(hw, n, c_in, c_out, dtype_bytes, resident_budget):
    """Pick (hw_padded, tile): lane-dense tile sized from a VMEM byte budget."""
    hw_pad = _round_up(hw, _LANE)
    # double-buffered (in + out) block bytes per lane column
    per_lane = 2 * (c_in + c_out) * dtype_bytes
    cap = max(_LANE, min(_MAX_HW_TILE,
                         (resident_budget // per_lane) // _LANE * _LANE))
    if hw_pad <= cap:
        tile = hw_pad
    else:
        # Largest multiple-of-128 divisor of hw_pad not above cap.
        best = 0
        t = cap
        while t >= _LANE:
            if hw_pad % t == 0:
                best = t
                break
            t -= _LANE
        if best * 2 >= cap:
            tile = best
        else:
            tile = cap                       # awkward HW: pad up to a tile multiple
            hw_pad = _round_up(hw_pad, tile)
    # v7x megacore: keep >= 2 parallel grid steps so both TensorCores get work.
    if n * (hw_pad // tile) < 2 and hw_pad >= 2 * _LANE:
        tile = _round_up(hw_pad, 2 * _LANE) // 2
        hw_pad = 2 * tile
    return hw_pad, tile


def _erf_f32(x):
    """erf via Abramowitz & Stegun 7.1.26 (|err| ~ 1.5e-7 + tiny recip term).

    The 1/(1 + p|x|) term uses the EUP approximate reciprocal plus one Newton
    step instead of a precise divide (keeps the divide off the VALU/EUP precise
    path); everything else is mul/add/exp/where so it lowers on all TPU gens.
    """
    p = jnp.float32(0.3275911)
    a1 = jnp.float32(0.254829592)
    a2 = jnp.float32(-0.284496736)
    a3 = jnp.float32(1.421413741)
    a4 = jnp.float32(-1.453152027)
    a5 = jnp.float32(1.061405429)
    ax = jnp.abs(x)
    d = 1.0 + p * ax
    t0 = pl.reciprocal(d, approx=True)
    t = t0 * (2.0 - d * t0)                      # one Newton step -> ~f32 accurate
    poly = ((((a5 * t + a4) * t + a3) * t + a2) * t + a1) * t
    e = 1.0 - poly * jnp.exp(-ax * ax)
    return jnp.where(x >= 0, e, -e)


def _gelu_exact(x):
    # torch.nn.GELU() default is the exact (erf-based) form, not the tanh approx.
    return 0.5 * x * (1.0 + _erf_f32(x * jnp.float32(_SQRT_HALF)))


def _conv1x1_two_mm_kernel(x_ref, w1_ref, b1_ref, w2_ref, b2_ref, o_ref, *,
                           act_learn):
    # Matmuls run in the operands' native dtype (bf16 => fast MXU path),
    # accumulation / bias / activations in f32.
    x = x_ref[...]                                            # (C_in, T)
    y = jnp.dot(w1_ref[...], x, preferred_element_type=jnp.float32) + b1_ref[...]
    y = jnp.where(y >= 0, y, jnp.float32(act_learn) * y)      # F.leaky_relu
    y = y.astype(x.dtype)                                     # back to MXU dtype
    z = jnp.dot(w2_ref[...], y, preferred_element_type=jnp.float32) + b2_ref[...]
    o_ref[...] = _gelu_exact(z).astype(o_ref.dtype)


def _conv1x1_fused_kernel(x_ref, w_ref, b_ref, o_ref):
    # act_learn == 1 path: single folded matmul + bias + GELU.
    z = jnp.dot(w_ref[...], x_ref[...],
                preferred_element_type=jnp.float32) + b_ref[...]
    o_ref[...] = _gelu_exact(z).astype(o_ref.dtype)


def conv1x1_block(x, w1, b1, w2, b2, *, act_learn=1.0):
    """Conv1x1Block.forward (deploy=False, train_act=True, use_bn=False, 'gelu').

    x:  (N, C_in, H, W)   -- matmuls run in x.dtype on the MXU (bf16 => fast path)
    w1: (C_out, C_in),  b1: (C_out,)    -- conv1 1x1 kernel (squeezed) + bias
    w2: (C_out, C_out), b2: (C_out,)    -- conv2 1x1 kernel (squeezed) + bias
    Returns (N, C_out, H, W) in x.dtype.
    """
    N, C_in, H, W = x.shape
    C_out = w1.shape[0]
    HW = H * W
    cdtype = x.dtype
    f32 = jnp.float32
    dtype_bytes = jnp.dtype(cdtype).itemsize

    cap = _vmem_capacity_bytes()
    # Keep pipelined block residency under ~half physical VMEM (v7x: 64 MiB).
    resident_budget = min(48 << 20, cap // 2)
    hw_pad, tile = _plan_hw_tiling(HW, N, C_in, C_out, dtype_bytes, resident_budget)
    grid = (N, hw_pad // tile)

    x_flat = x.reshape(N, C_in, HW)
    if hw_pad != HW:
        x_flat = jnp.pad(x_flat, ((0, 0), (0, 0), (0, hw_pad - HW)))

    fused = (float(act_learn) == 1.0)
    if fused:
        # leaky_relu(., 1) == identity: fold the two 1x1 convs on the host
        # (same algebra as the module's get_equivalent_kernel_bias).
        hp = jax.lax.Precision.HIGHEST
        w_fold = jnp.dot(w2.astype(f32), w1.astype(f32), precision=hp)
        b_fold = (jnp.dot(w2.astype(f32), b1.astype(f32).reshape(-1, 1), precision=hp)
                  + b2.astype(f32).reshape(-1, 1))
        ops = (w_fold.astype(cdtype), b_fold)
        kernel = _conv1x1_fused_kernel
        w_specs = [
            pl.BlockSpec((C_out, C_in), lambda n, t: (0, 0)),
            pl.BlockSpec((C_out, 1), lambda n, t: (0, 0)),
        ]
        weight_bytes = C_out * C_in * dtype_bytes + C_out * 4
    else:
        # Convert weights/biases ONCE here (not per grid step inside the kernel).
        ops = (w1.astype(cdtype), b1.astype(f32).reshape(C_out, 1),
               w2.astype(cdtype), b2.astype(f32).reshape(C_out, 1))
        kernel = functools.partial(_conv1x1_two_mm_kernel,
                                   act_learn=float(act_learn))
        w_specs = [
            pl.BlockSpec((C_out, C_in), lambda n, t: (0, 0)),
            pl.BlockSpec((C_out, 1), lambda n, t: (0, 0)),
            pl.BlockSpec((C_out, C_out), lambda n, t: (0, 0)),
            pl.BlockSpec((C_out, 1), lambda n, t: (0, 0)),
        ]
        weight_bytes = (C_out * C_in + C_out * C_out) * dtype_bytes + 2 * C_out * 4

    # Raise the scoped-VMEM limit explicitly (v5e default is only 16 MiB).
    block_bytes = (C_in + C_out) * tile * dtype_bytes
    vmem_limit = int(min(int(cap * 0.75),
                         max(32 << 20, 2 * block_bytes + 2 * weight_bytes + (4 << 20))))

    out = pl.pallas_call(
        kernel,
        out_shape=jax.ShapeDtypeStruct((N, C_out, hw_pad), cdtype),
        grid_spec=pltpu.PrefetchScalarGridSpec(
            num_scalar_prefetch=0,
            grid=grid,
            in_specs=[
                # Batch dim squeezed from the kernel view; HW lane-dense tiled.
                pl.BlockSpec((None, C_in, tile), lambda n, t: (n, 0, t)),
            ] + w_specs,
            out_specs=pl.BlockSpec((None, C_out, tile), lambda n, t: (n, 0, t)),
        ),
        compiler_params=pltpu.CompilerParams(
            dimension_semantics=("parallel", "parallel"),
            vmem_limit_bytes=vmem_limit,
        ),
    )(x_flat, *ops)

    if hw_pad != HW:
        out = out[:, :, :HW]
    return out.reshape(N, C_out, H, W)


def conv1x1_block_ref(x, w1, b1, w2, b2, act_learn=1.0):
    """Pure-JAX f32 reference."""
    hp = jax.lax.Precision.HIGHEST
    f32 = jnp.float32
    y = jnp.einsum('oc,nchw->nohw', w1.astype(f32), x.astype(f32),
                   precision=hp) + b1.astype(f32).reshape(1, -1, 1, 1)
    y = jnp.where(y >= 0, y, act_learn * y)
    y = jnp.einsum('oc,nchw->nohw', w2.astype(f32), y,
                   precision=hp) + b2.astype(f32).reshape(1, -1, 1, 1)
    return jax.nn.gelu(y, approximate=False)


def _check(out, ref, name, atol, rtol):
    ok = jnp.allclose(out.astype(jnp.float32), ref, atol=atol, rtol=rtol)
    assert ok, f"mismatch vs reference ({name})"


if __name__ == "__main__":
    key = jax.random.PRNGKey(0)
    ks = jax.random.split(key, 15)
    bf16 = jnp.bfloat16
    # Tolerances sized for end-to-end bf16 operands (2^-8 mantissa) vs f32 ref.
    ATOL, RTOL = 1.5e-2, 1e-2

    # --- Test 1: module-like small shape, bf16 MXU fast path, act_learn=1 (fold) ---
    N, C_in, C_out, H, W = 2, 4, 8, 16, 16
    x = jax.random.normal(ks[0], (N, C_in, H, W), jnp.float32).astype(bf16)
    w1 = (jax.random.normal(ks[1], (C_out, C_in), jnp.float32) / C_in ** 0.5).astype(bf16)
    b1 = (0.1 * jax.random.normal(ks[2], (C_out,), jnp.float32)).astype(bf16)
    w2 = (jax.random.normal(ks[3], (C_out, C_out), jnp.float32) / C_out ** 0.5).astype(bf16)
    b2 = (0.1 * jax.random.normal(ks[4], (C_out,), jnp.float32)).astype(bf16)

    out = jax.block_until_ready(conv1x1_block(x, w1, b1, w2, b2, act_learn=1.0))
    assert out.shape == (N, C_out, H, W) and out.dtype == x.dtype
    _check(out, conv1x1_block_ref(x, w1, b1, w2, b2, 1.0), "test 1", ATOL, RTOL)

    # --- Test 2: larger HW exercising lane tiling, two-matmul path (act_learn=0.1) ---
    N2, C2i, C2o, H2, W2 = 2, 16, 16, 64, 64
    x2 = jax.random.normal(ks[5], (N2, C2i, H2, W2), jnp.float32).astype(bf16)
    w1b = (jax.random.normal(ks[6], (C2o, C2i), jnp.float32) / C2i ** 0.5).astype(bf16)
    b1b = (0.1 * jax.random.normal(ks[7], (C2o,), jnp.float32)).astype(bf16)
    w2b = (jax.random.normal(ks[8], (C2o, C2o), jnp.float32) / C2o ** 0.5).astype(bf16)
    b2b = (0.1 * jax.random.normal(ks[9], (C2o,), jnp.float32)).astype(bf16)

    out2 = jax.block_until_ready(conv1x1_block(x2, w1b, b1b, w2b, b2b, act_learn=0.1))
    assert out2.shape == (N2, C2o, H2, W2)
    _check(out2, conv1x1_block_ref(x2, w1b, b1b, w2b, b2b, 0.1), "test 2", ATOL, RTOL)

    # --- Test 3: awkward spatial size (HW=100 -> padded to 128), odd channels, N=1 ---
    N3, C3i, C3o, H3, W3 = 1, 3, 5, 10, 10
    x3 = jax.random.normal(ks[10], (N3, C3i, H3, W3), jnp.float32).astype(bf16)
    w1c = (jax.random.normal(ks[11], (C3o, C3i), jnp.float32) / C3i ** 0.5).astype(bf16)
    b1c = (0.1 * jax.random.normal(ks[12], (C3o,), jnp.float32)).astype(bf16)
    w2c = (jax.random.normal(ks[13], (C3o, C3o), jnp.float32) / C3o ** 0.5).astype(bf16)
    b2c = (0.1 * jax.random.normal(ks[14], (C3o,), jnp.float32)).astype(bf16)

    out3 = jax.block_until_ready(conv1x1_block(x3, w1c, b1c, w2c, b2c, act_learn=0.25))
    assert out3.shape == (N3, C3o, H3, W3)
    _check(out3, conv1x1_block_ref(x3, w1c, b1c, w2c, b2c, 0.25), "test 3", ATOL, RTOL)

    print("KERNEL_OK")
</pallas_src>

<mosaic_0001>
module attributes {stable_mosaic.version = 11 : i64} {
  func.func @_conv1x1_fused_kernel(%arg0: i32, %arg1: i32, %arg2: memref<1x4x256xbf16, #tpu.memory_space<vmem>>, %arg3: memref<8x4xbf16, #tpu.memory_space<vmem>>, %arg4: memref<8x1xf32, #tpu.memory_space<vmem>>, %arg5: memref<1x8x256xbf16, #tpu.memory_space<vmem>>) attributes {dimension_semantics = [#tpu.dimension_semantics<parallel>, #tpu.dimension_semantics<parallel>], iteration_bounds = array<i64: 2, 1>, scalar_prefetch = 0 : i64, scratch_operands = 0 : i64, tpu.core_type = #tpu.core_type<tc>, window_params = [{transform_indices = @transform_0, window_bounds = array<i64: 1, 4, 256>}, {pipeline_mode = #tpu.pipeline_mode<synchronous>, transform_indices = @transform_1, window_bounds = array<i64: 8, 4>}, {pipeline_mode = #tpu.pipeline_mode<synchronous>, transform_indices = @transform_2, window_bounds = array<i64: 8, 1>}, {transform_indices = @transform_3, window_bounds = array<i64: 1, 8, 256>}]} {
    %c0 = arith.constant 0 : index
    %c0_0 = arith.constant 0 : index
    %0 = vector.load %arg3[%c0, %c0_0] : memref<8x4xbf16, #tpu.memory_space<vmem>>, vector<8x4xbf16>
    %c0_1 = arith.constant 0 : index
    %c0_2 = arith.constant 0 : index
    %c0_3 = arith.constant 0 : index
    %1 = vector.load %arg2[%c0_1, %c0_2, %c0_3] : memref<1x4x256xbf16, #tpu.memory_space<vmem>>, vector<1x4x256xbf16>
    %2 = vector.shape_cast %1 : vector<1x4x256xbf16> to vector<4x256xbf16>
    %cst = arith.constant dense<0.000000e+00> : vector<8x256xf32>
    %3 = tpu.matmul %0, %2, %cst {dimension_numbers = #tpu.dot_dimension_numbers<[1], [0], [0], [1], [0, 0, 1, 1], [], []>} : vector<8x4xbf16>, vector<4x256xbf16>, vector<8x256xf32> -> vector<8x256xf32>
    %c0_4 = arith.constant 0 : index
    %c0_5 = arith.constant 0 : index
    %4 = vector.load %arg4[%c0_4, %c0_5] : memref<8x1xf32, #tpu.memory_space<vmem>>, vector<8x1xf32>
    %5 = vector.broadcast %4 : vector<8x1xf32> to vector<8x256xf32>
    %6 = arith.addf %3, %5 : vector<8x256xf32>
    %cst_6 = arith.constant 5.000000e-01 : f32
    %7 = vector.broadcast %cst_6 : f32 to vector<8x256xf32>
    %8 = arith.mulf %7, %6 : vector<8x256xf32>
    %cst_7 = arith.constant 0.707106769 : f32
    %9 = vector.broadcast %cst_7 : f32 to vector<8x256xf32>
    %10 = arith.mulf %6, %9 : vector<8x256xf32>
    %11 = math.absf %10 : vector<8x256xf32>
    %cst_8 = arith.constant 0.327591091 : f32
    %12 = vector.broadcast %cst_8 : f32 to vector<8x256xf32>
    %13 = arith.mulf %12, %11 : vector<8x256xf32>
    %cst_9 = arith.constant 1.000000e+00 : f32
    %14 = vector.broadcast %cst_9 : f32 to vector<8x256xf32>
    %15 = arith.addf %14, %13 : vector<8x256xf32>
    %16 = tpu.reciprocal %15 {approx = true} : vector<8x256xf32> -> vector<8x256xf32>
    %17 = arith.mulf %15, %16 : vector<8x256xf32>
    %cst_10 = arith.constant 2.000000e+00 : f32
    %18 = vector.broadcast %cst_10 : f32 to vector<8x256xf32>
    %19 = arith.subf %18, %17 : vector<8x256xf32>
    %20 = arith.mulf %16, %19 : vector<8x256xf32>
    %cst_11 = arith.constant 1.06140542 : f32
    %21 = vector.broadcast %cst_11 : f32 to vector<8x256xf32>
    %22 = arith.mulf %21, %20 : vector<8x256xf32>
    %cst_12 = arith.constant -1.45315206 : f32
    %23 = vector.broadcast %cst_12 : f32 to vector<8x256xf32>
    %24 = arith.addf %22, %23 : vector<8x256xf32>
    %25 = arith.mulf %24, %20 : vector<8x256xf32>
    %cst_13 = arith.constant 1.42141378 : f32
    %26 = vector.broadcast %cst_13 : f32 to vector<8x256xf32>
    %27 = arith.addf %25, %26 : vector<8x256xf32>
    %28 = arith.mulf %27, %20 : vector<8x256xf32>
    %cst_14 = arith.constant -0.284496725 : f32
    %29 = vector.broadcast %cst_14 : f32 to vector<8x256xf32>
    %30 = arith.addf %28, %29 : vector<8x256xf32>
    %31 = arith.mulf %30, %20 : vector<8x256xf32>
    %cst_15 = arith.constant 0.254829586 : f32
    %32 = vector.broadcast %cst_15 : f32 to vector<8x256xf32>
    %33 = arith.addf %31, %32 : vector<8x256xf32>
    %34 = arith.mulf %33, %20 : vector<8x256xf32>
    %cst_16 = arith.constant 0.000000e+00 : f32
    %35 = vector.broadcast %cst_16 : f32 to vector<8x256xf32>
    %36 = arith.subf %35, %11 : vector<8x256xf32>
    %37 = arith.mulf %36, %11 : vector<8x256xf32>
    %38 = math.exp %37 : vector<8x256xf32>
    %39 = arith.mulf %34, %38 : vector<8x256xf32>
    %cst_17 = arith.constant 1.000000e+00 : f32
    %40 = vector.broadcast %cst_17 : f32 to vector<8x256xf32>
    %41 = arith.subf %40, %39 : vector<8x256xf32>
    %cst_18 = arith.constant 0.000000e+00 : f32
    %42 = vector.broadcast %cst_18 : f32 to vector<8x256xf32>
    %43 = arith.cmpf oge, %10, %42 : vector<8x256xf32>
    %cst_19 = arith.constant 0.000000e+00 : f32
    %44 = vector.broadcast %cst_19 : f32 to vector<8x256xf32>
    %45 = arith.subf %44, %41 : vector<8x256xf32>
    %46 = arith.select %43, %41, %45 : vector<8x256xi1>, vector<8x256xf32>
    %cst_20 = arith.constant 1.000000e+00 : f32
    %47 = vector.broadcast %cst_20 : f32 to vector<8x256xf32>
    %48 = arith.addf %47, %46 : vector<8x256xf32>
    %49 = arith.mulf %8, %48 : vector<8x256xf32>
    %50 = arith.truncf %49 : vector<8x256xf32> to vector<8x256xbf16>
    %c0_21 = arith.constant 0 : index
    %c0_22 = arith.constant 0 : index
    %c0_23 = arith.constant 0 : index
    %51 = vector.load %arg5[%c0_21, %c0_22, %c0_23] : memref<1x8x256xbf16, #tpu.memory_space<vmem>>, vector<1x8x256xbf16>
    %52 = vector.shape_cast %51 : vector<1x8x256xbf16> to vector<8x256xbf16>
    %53 = vector.shape_cast %50 : vector<8x256xbf16> to vector<1x8x256xbf16>
    tpu.vector_store %arg5[%c0_21, %c0_22, %c0_23], %53 {strides = array<i32>} : memref<1x8x256xbf16, #tpu.memory_space<vmem>>, vector<1x8x256xbf16>,
    return
  }
  func.func @transform_0(%arg0: i32, %arg1: i32) -> (i32, i32, i32) {
    %c0_i32 = arith.constant 0 : i32
    %c0_i32_0 = arith.constant 0 : i32
    return %arg0, %c0_i32, %arg1 : i32, i32, i32
  }
  func.func @transform_1(%arg0: i32, %arg1: i32) -> (i32, i32) {
    %c0_i32 = arith.constant 0 : i32
    %c0_i32_0 = arith.constant 0 : i32
    %c0_i32_1 = arith.constant 0 : i32
    return %c0_i32, %c0_i32_0 : i32, i32
  }
  func.func @transform_2(%arg0: i32, %arg1: i32) -> (i32, i32) {
    %c0_i32 = arith.constant 0 : i32
    %c0_i32_0 = arith.constant 0 : i32
    %c0_i32_1 = arith.constant 0 : i32
    return %c0_i32, %c0_i32_0 : i32, i32
  }
  func.func @transform_3(%arg0: i32, %arg1: i32) -> (i32, i32, i32) {
    %c0_i32 = arith.constant 0 : i32
    %c0_i32_0 = arith.constant 0 : i32
    return %arg0, %c0_i32, %arg1 : i32, i32, i32
  }
}

</mosaic_0001>

<llo_original>
// kernel: tpu_custom_call.1
$region0: #{tpu_custom_call.1}
  #allocation0 [shape = 'u32[]', space=smem, size = 0x4, offset = 0x4, fixed_abs, tag = 'smem constant byte address 0x4 - core index']
  #allocation1 [shape = 'u32[72,128]{1,0:T(1,128)}', space=vmem, size = 0x9000, scoped, tag = 'internal scratch']
  %s0 = inlined_call_operand.vmem [shape: bf16[2,4,256], index: 0, kind: input, shape index: {}]
  %s1 = inlined_call_operand.vmem [shape: bf16[8,4], index: 1, kind: input, shape index: {}]
  %s2 = inlined_call_operand.vmem [shape: f32[8,1], index: 2, kind: input, shape index: {}]
  %s3 = inlined_call_operand.hbm [shape: bf16[2,8,256], index: 3, kind: output, shape index: {}]
  %s4 = sld [smem:[#allocation0]]
  $region45: #{tpu_custom_call.1} parent=0
    _
  %s6 = ssub.s32 1, %s4
  %s7 = scalar_select 0, %s6, %s4
  $region1: #{tpu_custom_call.1} parent=0
    #allocation2 [shape = 'u8[8192]{0}', space=vmem, size = 0x2000, scoped, tag = 'output window, operand 0']
    #allocation3 [shape = 's32[2]{0}', space=sflag, size = 0x8, scoped, tag = 'scoped memory for tpu_custom_call.1']
    %8 = vsyncpa [#allocation3], 0
    %s9 = scalar_lea.sflag [#allocation3], 1
    %10 = vsyncpa %s9, 0
    loop: start=0, step=1, limit=4
    $region2: #{tpu_custom_call.1} parent=1 // loop_pre_header
      _
    $region3: #{tpu_custom_call.1} parent=1 // loop_header
      %s12 = sphi 0, %s16
      %p13 = scmp.ge.s32.totalorder %s12, 4
      %s19 = sphi 0, %s31
      %s20 = sphi 0, %s27
      %s21 = sphi 0, %s19
      %s22 = sphi 0, %s20
      %s23 = sphi 0, %s21
      %s24 = sphi 0, %s22
      %s36 = sphi 0, %s38
      %s39 = sphi 0, %s36
      %s40 = sphi 0, %s39
      %s56 = sphi 0, %s40
      %s60 = sphi 0, %s60
      %s62 = sphi 0, %s60
      %s63 = sphi 0, %s62
      %s77 = sphi 0, %s63
      %s81 = sphi 0, %s81
      %s83 = sphi 0, %s81
      %s84 = sphi 0, %s83
      %s98 = sphi 0, %s84
      %s106 = sphi 0, %s108
      %s109 = sphi 0, %s106
      %s110 = sphi 0, %s109
      %s126 = sphi 0, %s110
    $region4: #{tpu_custom_call.1} parent=1 // loop_header_branch
      %15 = sbr.rel (%p13) target = $region8
    $region5: #{tpu_custom_call.1} parent=1 // loop_body
      %s17 = ssub.s32 %s12, 1
      %s18 = ssub.s32 %s12, 2
      %s25 = sadd.s32 1, %s20
      %p26 = scmp.ge.s32.totalorder %s25, 1
      %s27 = scalar_select %p26, 0, %s25
      %s28 = sadd.s32 1, %s19
      %s29 = scalar_select %p26, %s28, %s19
      %p30 = scmp.ge.s32.totalorder %s29, 2
      %s31 = scalar_select %p30, 0, %s29
      %s32 = ssub.s32 %s19, %s31
      %s33 = ssub.s32 %s20, %s27
      %s34 = sor.u32 %s32, %s33
      %p35 = scmp.eq.s32.totalorder %s34, 0
      %s37 = sadd.s32 %s36, 1
      %s38 = scalar_select %p35, %s36, %s37
      %p41 = pneg %p35
      %p42 = scmp.eq.s32.totalorder %s12, 1
      %p43 = por %p41, %p42
      %p44 = scmp.ne.s32.totalorder %s36, %s39
      %p45 = scmp.eq.s32.totalorder %s12, 0
      %p46 = por %p44, %p45
      %p47 = scmp.ne.s32.totalorder %s36, %s39
      %p48 = scmp.eq.s32.totalorder %s17, 1
      %p49 = por %p47, %p48
      %p50 = scmp.ne.s32.totalorder %s39, %s40
      %p51 = scmp.eq.s32.totalorder %s17, 0
      %p52 = por %p50, %p51
      %p53 = scmp.ne.s32.totalorder %s39, %s40
      %p54 = scmp.eq.s32.totalorder %s18, 1
      %p55 = por %p53, %p54
      %p57 = scmp.ne.s32.totalorder %s40, %s56
      %p58 = scmp.eq.s32.totalorder %s18, 0
      %p59 = por %p57, %p58
      %s61 = sadd.s32 %s60, 1
      %p64 = scmp.eq.s32.totalorder %s12, 1
      %p65 = scmp.ne.s32.totalorder %s60, %s62
      %p66 = scmp.eq.s32.totalorder %s12, 0
      %p67 = por %p65, %p66
      %p68 = scmp.ne.s32.totalorder %s60, %s62
      %p69 = scmp.eq.s32.totalorder %s17, 1
      %p70 = por %p68, %p69
      %p71 = scmp.ne.s32.totalorder %s62, %s63
      %p72 = scmp.eq.s32.totalorder %s17, 0
      %p73 = por %p71, %p72
      %p74 = scmp.ne.s32.totalorder %s62, %s63
      %p75 = scmp.eq.s32.totalorder %s18, 1
      %p76 = por %p74, %p75
      %p78 = scmp.ne.s32.totalorder %s63, %s77
      %p79 = scmp.eq.s32.totalorder %s18, 0
      %p80 = por %p78, %p79
      %s82 = sadd.s32 %s81, 1
      %p85 = scmp.eq.s32.totalorder %s12, 1
      %p86 = scmp.ne.s32.totalorder %s81, %s83
      %p87 = scmp.eq.s32.totalorder %s12, 0
      %p88 = por %p86, %p87
      %p89 = scmp.ne.s32.totalorder %s81, %s83
      %p90 = scmp.eq.s32.totalorder %s17, 1
      %p91 = por %p89, %p90
      %p92 = scmp.ne.s32.totalorder %s83, %s84
      %p93 = scmp.eq.s32.totalorder %s17, 0
      %p94 = por %p92, %p93
      %p95 = scmp.ne.s32.totalorder %s83, %s84
      %p96 = scmp.eq.s32.totalorder %s18, 1
      %p97 = por %p95, %p96
      %p99 = scmp.ne.s32.totalorder %s84, %s98
      %p100 = scmp.eq.s32.totalorder %s18, 0
      %p101 = por %p99, %p100
      %s102 = ssub.s32 %s19, %s31
      %s103 = ssub.s32 %s20, %s27
      %s104 = sor.u32 %s102, %s103
      %p105 = scmp.eq.s32.totalorder %s104, 0
      %s107 = sadd.s32 %s106, 1
      %s108 = scalar_select %p105, %s106, %s107
      %p111 = pneg %p105
      %p112 = scmp.eq.s32.totalorder %s12, 1
      %p113 = por %p111, %p112
      %p114 = scmp.ne.s32.totalorder %s106, %s109
      %p115 = scmp.eq.s32.totalorder %s12, 0
      %p116 = por %p114, %p115
      %p117 = scmp.ne.s32.totalorder %s106, %s109
      %p118 = scmp.eq.s32.totalorder %s17, 1
      %p119 = por %p117, %p118
      %p120 = scmp.ne.s32.totalorder %s109, %s110
      %p121 = scmp.eq.s32.totalorder %s17, 0
      %p122 = por %p120, %p121
      %p123 = scmp.ne.s32.totalorder %s109, %s110
      %p124 = scmp.eq.s32.totalorder %s18, 1
      %p125 = por %p123, %p124
      %p127 = scmp.ne.s32.totalorder %s110, %s126
      %p128 = scmp.eq.s32.totalorder %s18, 0
      %p129 = por %p127, %p128
      %p130 = scmp.le.s32.totalorder 1, %s12
      %p131 = scmp.lt.s32.totalorder %s12, 3
      %p132 = pnand %p130, %p131
      %p133 = pneg %p132
      // Predicated region
      $region9: #{tpu_custom_call.1} parent=5 // pred_check
        _
      $region10: #{tpu_custom_call.1} parent=5 // pred_check_branch
        %135 = sbr.rel (%p132) target = $region12
      $region11: #{tpu_custom_call.1} parent=5 // pred_region
        %s136 = ssub.s32 %s12, 1
        // Predicated region
        $region13: #{tpu_custom_call.1} parent=11 // pred_check
          %p137 = pneg %p73
        $region14: #{tpu_custom_call.1} parent=11 // pred_check_branch
          %139 = sbr.rel (%p137) target = $region16
        $region15: #{tpu_custom_call.1} parent=11 // pred_region
          _
        $region16: #{tpu_custom_call.1} parent=11 // pred_fallthru
          _
        // Predicated region
        $region17: #{tpu_custom_call.1} parent=11 // pred_check
          %p140 = pneg %p94
        $region18: #{tpu_custom_call.1} parent=11 // pred_check_branch
          %142 = sbr.rel (%p140) target = $region20
        $region19: #{tpu_custom_call.1} parent=11 // pred_region
          _
        $region20: #{tpu_custom_call.1} parent=11 // pred_fallthru
          _
      $region12: #{tpu_custom_call.1} parent=5 // pred_fallthru
        _
      %p143 = scmp.lt.s32.totalorder %s12, 2
      // Predicated region
      $region21: #{tpu_custom_call.1} parent=5 // pred_check
        %p144 = pneg %p143
      $region22: #{tpu_custom_call.1} parent=5 // pred_check_branch
        %146 = sbr.rel (%p144) target = $region24
      $region23: #{tpu_custom_call.1} parent=5 // pred_region
        // Predicated region
        $region25: #{tpu_custom_call.1} parent=23 // pred_check
          %p147 = pneg %p46
        $region26: #{tpu_custom_call.1} parent=23 // pred_check_branch
          %149 = sbr.rel (%p147) target = $region28
        $region27: #{tpu_custom_call.1} parent=23 // pred_region
          %s150 = smul.u32 2, %s20
          %p151 = scmp.lt.s32.totalorder %s19, 1
          %s152 = scalar_select %p151, %s19, 1
          %p153 = scmp.lt.s32.totalorder %s150, 1
          %s154 = scalar_select %p153, %s150, 1
          %s155 = smul.addr %s152, 2
          %s156 = sadd.s32 %s154, %s155
          %s157 = smul.addr %s156, 2
          %s158 = scalar_lea.vmem %s0, %s157
          %s159 = smul.u32 2, %s20
        $region28: #{tpu_custom_call.1} parent=23 // pred_fallthru
          _
      $region24: #{tpu_custom_call.1} parent=5 // pred_fallthru
        _
      %p160 = scmp.le.s32.totalorder 1, %s12
      %p161 = scmp.lt.s32.totalorder %s12, 3
      %p162 = pnand %p160, %p161
      %p163 = pneg %p162
      // Predicated region
      $region29: #{tpu_custom_call.1} parent=5 // pred_check
        _
      $region30: #{tpu_custom_call.1} parent=5 // pred_check_branch
        %165 = sbr.rel (%p162) target = $region32
      $region31: #{tpu_custom_call.1} parent=5 // pred_region
        %s166 = ssub.s32 %s12, 1
        %s167 = smul.u32 2, %s22
        %p168 = scmp.lt.s32.totalorder %s21, 1
        %s169 = scalar_select %p168, %s21, 1
        %p170 = scmp.lt.s32.totalorder %s167, 1
        %s171 = scalar_select %p170, %s167, 1
        %s172 = smul.addr %s169, 2
        %s173 = sadd.s32 %s171, %s172
        %s174 = smul.addr %s173, 2
        %s175 = scalar_lea.vmem %s0, %s174
        %p176 = pneg %p52
        %p177 = pneg %p49
        %p178 = pneg %p73
        %p179 = pneg %p70
        %p180 = pneg %p94
        %p181 = pneg %p91
        %p182 = pneg %p122
        %p183 = pneg %p119
        %s184 = sand.u32 %s109, 1
        %s185 = scalar_lea.sflag [#allocation3], %s184
        %s186 = sand.u32 %s109, 1
        %s187 = smul.addr %s186, 8
        %s188 = scalar_lea.vmem [#allocation2], %s187
        %s189 = smul.u32 2, %s22
        %p190 = scmp.lt.s32.totalorder %s21, 1
        %s191 = scalar_select %p190, %s21, 1
        %p192 = scmp.lt.s32.totalorder %s189, 1
        %s193 = scalar_select %p192, %s189, 1
        %s194 = smul.addr %s191, 2
        %s195 = sadd.s32 %s193, %s194
        %s196 = smul.addr %s195, 2
        %s197 = scalar_lea.vmem %s0, %s196
        %s198 = smul.u32 2, %s22
        %s199 = smul.u32 2, %s22
        %v201 = vld [vmem:[%s1] sm:$0xf]
        %v202 = vld [vmem:[%s197] sm:$0xf]
        %v203 = vld [vmem:[%s2] sm:$0xff]
        %205 = vset.pattern.permute.xlu0 0
        %206 = vperm.xlu0 %205, %v203
        %v207 = vpop.permute.xlu0 %206
        %210 = vst [vmem:[#allocation1] ss:$4 sm:$0xff] %v202
        %v211 = vld.sshfl [vmem:[#allocation1] sm:$0xff pattern:$0x73625140]
        %v212 = vld.sshfl [vmem:[#allocation1 + $0x8] sm:$0xff pattern:$0x73625140]
        %vm213 = vcmask 31744
        %v215 = vsel %vm213, %v201, 0
        %vm217 = vcmask 1041408
        %v218 = vsel %vm217, %v211, 0
        %v220 = vsel %vm217, %v212, 0
        %222 = vmatpush.bf16.msra.mxu0 0
        %223 = vmatpush.bf16.msra.mxu0 0
        %224 = vmatpush.bf16.msra.mxu0 0
        %225 = vmatpush.bf16.msra.mxu0 0
        %226 = vmatpush.bf16.msra.mxu0 0
        %227 = vmatpush.bf16.msra.mxu0 0
        %228 = vmatpush.bf16.msra.mxu0 0
        %229 = vmatpush.bf16.msra.mxu0 %v218
        %230 = vmatmul.bf16.gmra.mxu0 %v215
        %v231 = vpop.f32.mrf.mxu0
        %v232 = vadd.f32 %v207, %v231
        %v233 = vpop.f32.mrf.mxu0
        %234 = vdwg.mxu0
        %235 = vmatpush.bf16.msra.mxu0 0
        %236 = vmatpush.bf16.msra.mxu0 0
        %237 = vmatpush.bf16.msra.mxu0 0
        %238 = vmatpush.bf16.msra.mxu0 0
        %239 = vmatpush.bf16.msra.mxu0 0
        %240 = vmatpush.bf16.msra.mxu0 0
        %241 = vmatpush.bf16.msra.mxu0 0
        %242 = vmatpush.bf16.msra.mxu0 %v220
        %243 = vmatmul.bf16.gmra.mxu0 %v215
        %v244 = vpop.f32.mrf.mxu0
        %v245 = vadd.f32 %v207, %v244
        %v246 = vpop.f32.mrf.mxu0
        %247 = vdwg.mxu0
        %v248 = vmul.f32 %v232, 0.5
        %v249 = vmul.f32 %v245, 0.5
        %v250 = vmul.f32 %v232, 0.70710677
        %v251 = vmul.f32 %v245, 0.70710677
        %v252 = vand.u32 2147483647, %v250
        %v253 = vand.u32 2147483647, %v251
        %v254 = vmul.f32 %v252, 0.3275911
        %v255 = vmul.f32 %v253, 0.3275911
        %v256 = vadd.f32 %v254, 1.0
        %v257 = vadd.f32 %v255, 1.0
        %v258 = vrcp.pop %v256
        %v259 = vrcp.pop %v257
        %v260 = vmul.f32 %v256, %v258
        %v261 = vmul.f32 %v257, %v259
        %v262 = vsub.f32 2.0, %v260
        %v263 = vsub.f32 2.0, %v261
        %v264 = vmul.f32 %v258, %v262
        %v265 = vmul.f32 %v259, %v263
        %v266 = vmul.f32 %v264, 1.0614054
        %v267 = vmul.f32 %v265, 1.0614054
        %v268 = vadd.f32 %v266, -1.4531521
        %v269 = vadd.f32 %v267, -1.4531521
        %v270 = vmul.f32 %v268, %v264
        %v271 = vmul.f32 %v269, %v265
        %v272 = vadd.f32 %v270, 1.4214138
        %v273 = vadd.f32 %v271, 1.4214138
        %v274 = vmul.f32 %v272, %v264
        %v275 = vmul.f32 %v273, %v265
        %v276 = vadd.f32 %v274, -0.28449672
        %v277 = vadd.f32 %v275, -0.28449672
        %v278 = vmul.f32 %v276, %v264
        %v279 = vmul.f32 %v277, %v265
        %v280 = vadd.f32 %v278, 0.2548296
        %v281 = vadd.f32 %v279, 0.2548296
        %v282 = vmul.f32 %v280, %v264
        %v283 = vmul.f32 %v281, %v265
        %v284 = vsub.f32 0.0, %v252
        %v285 = vsub.f32 0.0, %v253
        %v286 = vmul.f32 %v284, %v252
        %v287 = vmul.f32 %v285, %v253
        %v288 = vmul.f32 %v286, 1.442695
        %v289 = vpow.pop %v288
        %v290 = vmul.f32 %v287, 1.442695
        %v291 = vpow.pop %v290
        %v292 = vmul.f32 %v282, %v289
        %v293 = vmul.f32 %v283, %v291
        %v294 = vsub.f32 1.0, %v292
        %v295 = vsub.f32 1.0, %v293
        %vm296 = vcmp.ge.f32.partialorder %v250, 0.0
        %vm297 = vcmp.ge.f32.partialorder %v251, 0.0
        %v298 = vsub.f32 0.0, %v294
        %v299 = vsub.f32 0.0, %v295
        %v300 = vsel %vm296, %v294, %v298
        %v301 = vsel %vm297, %v295, %v299
        %v302 = vadd.f32 %v300, 1.0
        %v303 = vadd.f32 %v301, 1.0
        %v304 = vmul.f32 %v248, %v302
        %v305 = vmul.f32 %v249, %v303
        %v306 = vpack.c.bf16 %v305, %v304
        %307 = vst [vmem:[%s188] sm:$0xff] %v306
        %s308 = sand.u32 %s109, 1
        %s309 = scalar_lea.sflag [#allocation3], %s308
        %s310 = sand.u32 %s109, 1
        %s311 = smul.addr %s310, 8
        %s312 = scalar_lea.vmem [#allocation2], %s311
        // Predicated region
        $region33: #{tpu_custom_call.1} parent=31 // pred_check
          %p313 = pneg %p119
        $region34: #{tpu_custom_call.1} parent=31 // pred_check_branch
          %315 = sbr.rel (%p313) target = $region36
        $region35: #{tpu_custom_call.1} parent=31 // pred_region
          %s316 = smul.u32 2, %s22
          %318 = vsyncadd %s309, 0
          %s319 = smul.addr %s21, 2
          %s320 = sadd.s32 %s316, %s319
          %s321 = smul.addr %s320, 4
          %s322 = scalar_lea.hbm %s3, %s321
          %s324 = sshll.u32 %s312, 4
          %s325 = int_to_ptr.vmem [resolvable:$true] %s324
          %s326 = sshll.u32 %s322, 4
          %s327 = int_to_ptr.hbm [resolvable:$true] %s326
          %329 = dma.vmem_to_hbm [thread:$0]  %s325, 128, %s327, %s309
        $region36: #{tpu_custom_call.1} parent=31 // pred_fallthru
          _
      $region32: #{tpu_custom_call.1} parent=5 // pred_fallthru
        _
      %p330 = scmp.le.s32.totalorder 2, %s12
      // Predicated region
      $region37: #{tpu_custom_call.1} parent=5 // pred_check
        %p331 = pneg %p330
      $region38: #{tpu_custom_call.1} parent=5 // pred_check_branch
        %333 = sbr.rel (%p331) target = $region40
      $region39: #{tpu_custom_call.1} parent=5 // pred_region
        %s334 = ssub.s32 %s12, 2
        // Predicated region
        $region41: #{tpu_custom_call.1} parent=39 // pred_check
          %p335 = pneg %p125
        $region42: #{tpu_custom_call.1} parent=39 // pred_check_branch
          %337 = sbr.rel (%p335) target = $region44
        $region43: #{tpu_custom_call.1} parent=39 // pred_region
          %s338 = sand.u32 %s110, 1
          %s339 = scalar_lea.sflag [#allocation3], %s338
          %s340 = sand.u32 %s110, 1
          %s341 = smul.addr %s340, 8
          %s342 = scalar_lea.vmem [#allocation2], %s341
          %344 = dma.done %s339, 128
        $region44: #{tpu_custom_call.1} parent=39 // pred_fallthru
          _
      $region40: #{tpu_custom_call.1} parent=5 // pred_fallthru
        _
    $region6: #{tpu_custom_call.1} parent=1 // loop_footer
      %s16 = sadd.s32 1, %s12
    $region7: #{tpu_custom_call.1} parent=1 // loop_footer_branch
      %11 = sbr.rel target = $region3
    $region8: #{tpu_custom_call.1} parent=1 // loop_exit
      _
    %345 = vsyncpa [#allocation3], 1
    %s346 = scalar_lea.sflag [#allocation3], 1
    %347 = vsyncpa %s346, 1

</llo_original>
